<compile_context>
chip_gen: v5e
topology: v5e:2x2
jax: 0.10.0
libtpu: 0.0.40
codegen_flags: <defaults>
</compile_context>

<pallas_src>
import functools
import numpy as np
import jax
import jax.numpy as jnp
from jax.experimental import pallas as pl
from jax.experimental.pallas import tpu as pltpu


# ----------------- static operator matrices (parameter-only glue) ------------

def _patch_pool_matrix(seq_len, patch_len):
    """AvgPool1d(patch_len, stride=patch_len) as a (seq_len, patch_num) matrix."""
    pn = seq_len // patch_len
    P = np.zeros((seq_len, pn), np.float32)
    for t in range(seq_len):
        P[t, t // patch_len] = 1.0 / patch_len
    return P


def _moving_avg_matrix(n, pad):
    """ReplicationPad1d(pad) + AvgPool1d(2*pad+1, stride=1) as an (n, n) matrix."""
    k = 2 * pad + 1
    M = np.zeros((n, n), np.float32)
    for p in range(n):
        for d in range(-pad, pad + 1):
            q = min(max(p + d, 0), n - 1)
            M[q, p] += 1.0 / k
    return M


def _linear_interp_matrix(n_in, scale):
    """F.interpolate(mode='linear', align_corners=False) as (n_in, n_in*scale)."""
    n_out = n_in * scale
    U = np.zeros((n_in, n_out), np.float32)
    for j in range(n_out):
        src = max((j + 0.5) / scale - 0.5, 0.0)
        i0 = int(np.floor(src))
        w1 = src - i0
        i1 = i0 + 1 if i0 < n_in - 1 else i0
        U[i0, j] += 1.0 - w1
        U[i1, j] += w1
    return U


def _compose_operator(importance_mods, fc_weight, seq_len, pred_len, patch_len):
    """Fold the whole parameter chain into one stacked (L+P, L) operator."""
    patch_num = seq_len // patch_len
    patch_num_pred = pred_len // patch_len
    kernel_num = max(int(np.floor(np.log(seq_len - 1) / np.log(2))) - 1, 1)
    n_smooth = kernel_num - 1

    w = jax.nn.softmax(importance_mods.astype(jnp.float32))            # (K,)
    pool = jnp.asarray(_patch_pool_matrix(seq_len, patch_len))         # (L, pn)
    interp_in = jnp.asarray(_linear_interp_matrix(patch_num, patch_len))        # (pn, L)
    interp_pred = jnp.asarray(_linear_interp_matrix(patch_num_pred, patch_len))  # (pnp, P)

    m_comb = w[0] * jnp.eye(patch_num, dtype=jnp.float32)              # (pn, pn)
    for j in range(n_smooth):
        m_comb = m_comb + w[j + 1] * jnp.asarray(_moving_avg_matrix(patch_num, 2 ** j))

    pm = pool @ m_comb                                                 # (L, pn)
    w_trend = pm @ interp_in                                           # (L, L)
    w_pred = pm @ fc_weight.astype(jnp.float32).T @ interp_pred        # (L, P)
    # rows [:L] -> trend_fine operator ; rows [L:] -> trend_pred_fine operator
    return jnp.concatenate([w_trend.T, w_pred.T], axis=0)              # (L+P, L)


# --------------------------------- kernel ------------------------------------

def _decomp_kernel(x_ref, w_ref, season_ref, tpred_ref, *, seq_len):
    xb = x_ref[...]                                           # (L, tn) native dtype
    out = jnp.dot(w_ref[...], xb,                             # one MXU pass, f32 acc
                  preferred_element_type=jnp.float32)         # (L+P, tn)
    season_ref[...] = (xb.astype(jnp.float32) - out[:seq_len, :]).astype(season_ref.dtype)
    tpred_ref[...] = out[seq_len:, :].astype(tpred_ref.dtype)


# --------------------------------- wrapper -----------------------------------

def _vmem_budget_bytes():
    """Generation-aware VMEM budget (v7x: 64 MiB/TC, v5e/v6e: 128 MiB)."""
    try:
        cap = int(pltpu.get_tpu_info().vmem_capacity_bytes)
    except Exception:
        cap = 64 * 1024 * 1024
    if cap <= 64 * 1024 * 1024:
        return 40 * 1024 * 1024          # v7x: leave headroom under 64 MiB
    return 96 * 1024 * 1024              # v5e / v6e


def learnable_decomp(x, importance_mods, fc_weight, *, seq_len, pred_len, patch_len,
                     lane_tile=None):
    B, L, C = x.shape
    assert L == seq_len
    assert seq_len % patch_len == 0 and pred_len % patch_len == 0
    patch_num = seq_len // patch_len
    patch_num_pred = pred_len // patch_len
    kernel_num = max(int(np.floor(np.log(seq_len - 1) / np.log(2))) - 1, 1)
    assert importance_mods.shape == (kernel_num,)
    assert fc_weight.shape == (patch_num_pred, patch_num)

    out_dtype = x.dtype
    P = pred_len
    N = B * C

    # Composed constant operator, cast to the input dtype (bf16 operands run the
    # MXU at native rate; accumulation stays f32 in-kernel).
    w_stack = _compose_operator(importance_mods, fc_weight, seq_len, pred_len,
                                patch_len).astype(out_dtype)           # (L+P, L)

    # Lane-dense 2-D view: columns = batch*channels (fills MXU lanes, unmasked stores).
    x2 = jnp.transpose(x, (1, 0, 2)).reshape(L, N)

    x_bytes = np.dtype(out_dtype).itemsize
    budget = _vmem_budget_bytes()
    if lane_tile is None:
        per_col = 2 * (2 * L + P) * x_bytes            # double-buffered x/season/tpred per column
        const_b = 2 * (L + P) * L * x_bytes            # resident stacked weight
        avail = max(budget - const_b - (4 << 20), per_col * 256)
        max_cols = int(avail // per_col)
        if N <= 256:
            tn = N                                     # single full-width block
        else:
            tn = max((min(N, max_cols) // 256) * 256, 256)
            if tn >= N:                                # keep >= 2 grid steps (v7x megacore)
                tn = max(((N // 2) // 256) * 256, 256)
    else:
        tn = int(lane_tile)
    assert tn == N or tn % 128 == 0

    grid = (pl.cdiv(N, tn),)
    footprint = 2 * tn * (2 * L + P) * x_bytes + 2 * (L + P) * L * x_bytes
    vmem_limit = int(min(budget, max(32 << 20, footprint + (4 << 20))))

    kernel = functools.partial(_decomp_kernel, seq_len=seq_len)
    season2, tpred2 = pl.pallas_call(
        kernel,
        grid=grid,
        out_shape=(jax.ShapeDtypeStruct((L, N), out_dtype),
                   jax.ShapeDtypeStruct((P, N), out_dtype)),
        in_specs=[
            pl.BlockSpec((L, tn), lambda i: (0, i)),          # x slab tile (lane-dense)
            pl.BlockSpec((L + P, L), lambda i: (0, 0)),       # stacked weights (VMEM-resident)
        ],
        out_specs=(
            pl.BlockSpec((L, tn), lambda i: (0, i)),          # season
            pl.BlockSpec((P, tn), lambda i: (0, i)),          # trend_pred_fine
        ),
        compiler_params=pltpu.CompilerParams(
            dimension_semantics=("parallel",),
            vmem_limit_bytes=vmem_limit),
    )(x2, w_stack)

    season = season2.reshape(L, B, C).transpose(1, 0, 2)
    tpred = tpred2.reshape(P, B, C).transpose(1, 0, 2)
    # TODO(synk): fc_trend.weight.grad L2-decay side-effect is training-only
    # (acts on .grad); no inference-time equivalent, intentionally omitted.
    return season, tpred


# ------------------------------ pure-JAX reference ---------------------------

def reference(x, importance_mods, fc_weight, *, seq_len, pred_len, patch_len):
    B, L, C = x.shape
    patch_num = seq_len // patch_len
    kernel_num = max(int(np.floor(np.log(seq_len - 1) / np.log(2))) - 1, 1)

    xt = jnp.transpose(x, (0, 2, 1))                               # (B, C, L)
    tp = xt.reshape(B, C, patch_num, patch_len).mean(-1)           # (B, C, pn)
    w = jax.nn.softmax(importance_mods)
    trend = tp * w[0]
    for j in range(kernel_num - 1):
        pad = 2 ** j
        k = 2 * pad + 1
        padded = jnp.pad(tp, ((0, 0), (0, 0), (pad, pad)), mode='edge')
        mov = jnp.mean(jnp.stack([padded[..., d:d + patch_num] for d in range(k)], -1), -1)
        trend = trend + mov * w[j + 1]

    def interp(t, s):
        n = t.shape[-1]
        jidx = jnp.arange(n * s)
        src = jnp.maximum((jidx + 0.5) / s - 0.5, 0.0)
        i0 = jnp.floor(src).astype(jnp.int32)
        w1 = src - i0
        i1 = jnp.minimum(i0 + 1, n - 1)
        return t[..., i0] * (1.0 - w1) + t[..., i1] * w1

    trend_fine = interp(trend, patch_len)
    season = jnp.transpose(xt - trend_fine, (0, 2, 1))
    trend_pred = jnp.einsum('bcp,qp->bcq', trend, fc_weight)
    trend_pred_fine = jnp.transpose(interp(trend_pred, patch_len), (0, 2, 1))
    return season, trend_pred_fine


# ----------------------------------- main -------------------------------------

if __name__ == "__main__":
    key = jax.random.PRNGKey(0)
    k1, k2, k3, k4 = jax.random.split(key, 4)

    # --- config 1: small shapes, single-block grid, f32 ---
    seq_len, pred_len, patch_len = 16, 8, 4
    B, C = 2, 4
    patch_num = seq_len // patch_len
    patch_num_pred = pred_len // patch_len
    kernel_num = max(int(np.floor(np.log(seq_len - 1) / np.log(2))) - 1, 1)

    x = jax.random.normal(k1, (B, seq_len, C), jnp.float32)
    # module __init__ zero-initializes these parameters; use small deterministic
    # values so the forward pass is non-trivial (same shapes as the nn.Parameters).
    importance_mods = 0.1 * jax.random.normal(k2, (kernel_num,), jnp.float32)
    fc_weight = 0.1 * jax.random.normal(k3, (patch_num_pred, patch_num), jnp.float32)

    season, tpf = learnable_decomp(x, importance_mods, fc_weight,
                                   seq_len=seq_len, pred_len=pred_len,
                                   patch_len=patch_len)
    jax.block_until_ready((season, tpf))
    season_ref, tpf_ref = reference(x, importance_mods, fc_weight,
                                    seq_len=seq_len, pred_len=pred_len,
                                    patch_len=patch_len)
    assert season.shape == (B, seq_len, C) and tpf.shape == (B, pred_len, C)
    assert jnp.allclose(season, season_ref, atol=1e-4, rtol=1e-4)
    assert jnp.allclose(tpf, tpf_ref, atol=1e-4, rtol=1e-4)

    # bf16 native-dtype path (bf16 operands, f32 MXU accumulation) — loose check.
    season_bf, tpf_bf = learnable_decomp(x.astype(jnp.bfloat16),
                                         importance_mods, fc_weight,
                                         seq_len=seq_len, pred_len=pred_len,
                                         patch_len=patch_len)
    jax.block_until_ready((season_bf, tpf_bf))
    assert season_bf.dtype == jnp.bfloat16 and tpf_bf.dtype == jnp.bfloat16
    assert jnp.allclose(season_bf.astype(jnp.float32), season_ref, atol=1e-1)
    assert jnp.allclose(tpf_bf.astype(jnp.float32), tpf_ref, atol=1e-1)

    # --- config 2: lane-dense multi-step grid (N = B*C = 288 > 256) ---
    seq_len2, pred_len2, patch_len2 = 32, 16, 4
    B2, C2 = 3, 96
    patch_num2 = seq_len2 // patch_len2
    patch_num_pred2 = pred_len2 // patch_len2
    kernel_num2 = max(int(np.floor(np.log(seq_len2 - 1) / np.log(2))) - 1, 1)

    x_big = jax.random.normal(k4, (B2, seq_len2, C2), jnp.float32)
    ki2, kw2 = jax.random.split(k4)
    imods2 = 0.1 * jax.random.normal(ki2, (kernel_num2,), jnp.float32)
    fcw2 = 0.1 * jax.random.normal(kw2, (patch_num_pred2, patch_num2), jnp.float32)

    # auto lane tile (256 -> 2 grid steps, partial last block masked by Pallas)
    s2, t2 = learnable_decomp(x_big, imods2, fcw2, seq_len=seq_len2,
                              pred_len=pred_len2, patch_len=patch_len2)
    # forced 128-lane tile -> 3 grid steps
    s2b, t2b = learnable_decomp(x_big, imods2, fcw2, seq_len=seq_len2,
                                pred_len=pred_len2, patch_len=patch_len2,
                                lane_tile=128)
    jax.block_until_ready((s2, t2, s2b, t2b))
    s2_ref, t2_ref = reference(x_big, imods2, fcw2, seq_len=seq_len2,
                               pred_len=pred_len2, patch_len=patch_len2)
    assert jnp.allclose(s2, s2_ref, atol=1e-4, rtol=1e-4)
    assert jnp.allclose(t2, t2_ref, atol=1e-4, rtol=1e-4)
    assert jnp.allclose(s2b, s2_ref, atol=1e-4, rtol=1e-4)
    assert jnp.allclose(t2b, t2_ref, atol=1e-4, rtol=1e-4)

    print("KERNEL_OK")
</pallas_src>

<mosaic_0001>
module attributes {stable_mosaic.version = 11 : i64} {
  func.func @_decomp_kernel(%arg0: i32, %arg1: memref<16x8xf32, #tpu.memory_space<vmem>>, %arg2: memref<24x16xf32, #tpu.memory_space<vmem>>, %arg3: memref<16x8xf32, #tpu.memory_space<vmem>>, %arg4: memref<8x8xf32, #tpu.memory_space<vmem>>) attributes {dimension_semantics = [#tpu.dimension_semantics<parallel>], iteration_bounds = array<i64: 1>, scalar_prefetch = 0 : i64, scratch_operands = 0 : i64, tpu.core_type = #tpu.core_type<tc>, window_params = [{transform_indices = @transform_0, window_bounds = array<i64: 16, 8>}, {pipeline_mode = #tpu.pipeline_mode<synchronous>, transform_indices = @transform_1, window_bounds = array<i64: 24, 16>}, {transform_indices = @transform_2, window_bounds = array<i64: 16, 8>}, {transform_indices = @transform_3, window_bounds = array<i64: 8, 8>}]} {
    %c0 = arith.constant 0 : index
    %c0_0 = arith.constant 0 : index
    %0 = vector.load %arg1[%c0, %c0_0] : memref<16x8xf32, #tpu.memory_space<vmem>>, vector<16x8xf32>
    %c0_1 = arith.constant 0 : index
    %c0_2 = arith.constant 0 : index
    %1 = vector.load %arg2[%c0_1, %c0_2] : memref<24x16xf32, #tpu.memory_space<vmem>>, vector<24x16xf32>
    %cst = arith.constant dense<0.000000e+00> : vector<24x8xf32>
    %2 = tpu.matmul %1, %0, %cst {dimension_numbers = #tpu.dot_dimension_numbers<[1], [0], [0], [1], [0, 0, 1, 1], [], []>} : vector<24x16xf32>, vector<16x8xf32>, vector<24x8xf32> -> vector<24x8xf32>
    %3 = vector.extract_strided_slice %2 {offsets = [0, 0], sizes = [16, 8], strides = [1, 1]} : vector<24x8xf32> to vector<16x8xf32>
    %4 = arith.subf %0, %3 : vector<16x8xf32>
    %c0_3 = arith.constant 0 : index
    %c0_4 = arith.constant 0 : index
    %5 = vector.load %arg3[%c0_3, %c0_4] : memref<16x8xf32, #tpu.memory_space<vmem>>, vector<16x8xf32>
    tpu.vector_store %arg3[%c0_3, %c0_4], %4 {strides = array<i32>} : memref<16x8xf32, #tpu.memory_space<vmem>>, vector<16x8xf32>,
    %6 = vector.extract_strided_slice %2 {offsets = [16, 0], sizes = [8, 8], strides = [1, 1]} : vector<24x8xf32> to vector<8x8xf32>
    %c0_5 = arith.constant 0 : index
    %c0_6 = arith.constant 0 : index
    %7 = vector.load %arg4[%c0_5, %c0_6] : memref<8x8xf32, #tpu.memory_space<vmem>>, vector<8x8xf32>
    tpu.vector_store %arg4[%c0_5, %c0_6], %6 {strides = array<i32>} : memref<8x8xf32, #tpu.memory_space<vmem>>, vector<8x8xf32>,
    return
  }
  func.func @transform_0(%arg0: i32) -> (i32, i32) {
    %c0_i32 = arith.constant 0 : i32
    %c0_i32_0 = arith.constant 0 : i32
    return %c0_i32, %arg0 : i32, i32
  }
  func.func @transform_1(%arg0: i32) -> (i32, i32) {
    %c0_i32 = arith.constant 0 : i32
    %c0_i32_0 = arith.constant 0 : i32
    %c0_i32_1 = arith.constant 0 : i32
    return %c0_i32, %c0_i32_0 : i32, i32
  }
  func.func @transform_2(%arg0: i32) -> (i32, i32) {
    %c0_i32 = arith.constant 0 : i32
    %c0_i32_0 = arith.constant 0 : i32
    return %c0_i32, %arg0 : i32, i32
  }
  func.func @transform_3(%arg0: i32) -> (i32, i32) {
    %c0_i32 = arith.constant 0 : i32
    %c0_i32_0 = arith.constant 0 : i32
    return %c0_i32, %arg0 : i32, i32
  }
}

</mosaic_0001>

<llo_original>
// kernel: tpu_custom_call.1
$region0: #{tpu_custom_call.1}
  #allocation0 [shape = 'u32[]', space=smem, size = 0x4, offset = 0x4, fixed_abs, tag = 'smem constant byte address 0x4 - core index']
  #allocation1 [shape = 'u32[72,128]{1,0:T(1,128)}', space=vmem, size = 0x9000, scoped, tag = 'internal scratch']
  %s0 = inlined_call_operand.vmem [shape: f32[16,8], index: 0, kind: input, shape index: {}]
  %s1 = inlined_call_operand.vmem [shape: f32[24,16], index: 1, kind: input, shape index: {}]
  %s2 = inlined_call_operand.vmem [shape: f32[16,8], index: 2, kind: output, shape index: {0}]
  %s3 = inlined_call_operand.hbm [shape: f32[8,8], index: 3, kind: output, shape index: {1}]
  %4 = xla_tuple %s2, %s3
  %s5 = sld [smem:[#allocation0]]
  $region26: #{tpu_custom_call.1} parent=0
    _
  %s7 = ssub.s32 1, %s5
  %s8 = scalar_select 0, %s7, %s5
  $region1: #{tpu_custom_call.1} parent=0
    #allocation2 [shape = 'u8[4096]{0}', space=vmem, size = 0x1000, scoped, tag = 'output window, operand 1, single buffered']
    #allocation3 [shape = 's32[1]{0}', space=sflag, size = 0x4, scoped, tag = 'scoped memory for tpu_custom_call.1']
    %9 = vsyncpa [#allocation3], 0
    // Predicated region
    $region2: #{tpu_custom_call.1} parent=1 // pred_check
      _
    $region3: #{tpu_custom_call.1} parent=1 // pred_check_branch
      %11 = sbr.rel (0) target = $region5
    $region4: #{tpu_custom_call.1} parent=1 // pred_region
      _
    $region5: #{tpu_custom_call.1} parent=1 // pred_fallthru
      _
    // Predicated region
    $region6: #{tpu_custom_call.1} parent=1 // pred_check
      _
    $region7: #{tpu_custom_call.1} parent=1 // pred_check_branch
      %13 = sbr.rel (0) target = $region9
    $region8: #{tpu_custom_call.1} parent=1 // pred_region
      _
    $region9: #{tpu_custom_call.1} parent=1 // pred_fallthru
      _
    %v14 = vld [vmem:[%s0] sm:$0xff]
    %v15 = vld [vmem:[%s0 + $0x8] sm:$0xff]
    %v16 = vld [vmem:[%s1] sm:$0xff]
    %v17 = vld [vmem:[%s1 + $0x8] sm:$0xff]
    %v18 = vld [vmem:[%s1 + $0x10] sm:$0xff]
    %vm19 = vcmask 130048
    %v21 = vsel %vm19, %v16, 0
    %v24 = vsel %vm19, %v17, 0
    %v27 = vsel %vm19, %v18, 0
    %29 = vmatpush.msra.mxu0 0.0
    %30 = vmatpush.msra.mxu0 0.0
    %31 = vmatpush.msra.mxu0 0.0
    %32 = vmatpush.msra.mxu0 0.0
    %33 = vmatpush.msra.mxu0 0.0
    %34 = vmatpush.msra.mxu0 0.0
    %35 = vmatpush.msra.mxu0 0.0
    %36 = vmatpush.msra.mxu0 0.0
    %37 = vmatpush.msra.mxu0 0.0
    %38 = vmatpush.msra.mxu0 0.0
    %39 = vmatpush.msra.mxu0 0.0
    %40 = vmatpush.msra.mxu0 0.0
    %41 = vmatpush.msra.mxu0 0.0
    %42 = vmatpush.msra.mxu0 0.0
    %43 = vmatpush.msra.mxu0 %v15
    %44 = vmatpush.msra.mxu0 %v14
    %45 = vmatmul.f32.gmra.mxu0 %v21
    %v46 = vpop.f32.mrf.mxu0
    %v47 = vadd.f32 0.0, %v46
    %48 = vmatmul.f32.gmra.mxu0 %v24
    %v49 = vpop.f32.mrf.mxu0
    %v50 = vadd.f32 0.0, %v49
    %51 = vmatmul.f32.gmra.mxu0 %v27
    %v52 = vpop.f32.mrf.mxu0
    %v53 = vadd.f32 0.0, %v52
    %54 = vdwg.mxu0
    %v55 = vsub.f32 %v14, %v47
    %v56 = vsub.f32 %v15, %v50
    %vm57 = vcmask 64512
    %58 = vst.msk [vmem:[%s2] sm:$0xff] %vm57, %v55
    %59 = vst.msk [vmem:[%s2 + $0x8] sm:$0xff] %vm57, %v56
    %60 = vst.msk [vmem:[#allocation2] sm:$0xff] %vm57, %v53
    // Predicated region
    $region10: #{tpu_custom_call.1} parent=1 // pred_check
      _
    $region11: #{tpu_custom_call.1} parent=1 // pred_check_branch
      %62 = sbr.rel (0) target = $region13
    $region12: #{tpu_custom_call.1} parent=1 // pred_region
      _
    $region13: #{tpu_custom_call.1} parent=1 // pred_fallthru
      _
    // Predicated region
    $region14: #{tpu_custom_call.1} parent=1 // pred_check
      _
    $region15: #{tpu_custom_call.1} parent=1 // pred_check_branch
      %64 = sbr.rel (0) target = $region17
    $region16: #{tpu_custom_call.1} parent=1 // pred_region
      %66 = vsyncadd [#allocation3], 0
      %s68 = sshll.u32 [#allocation2], 4
      %s69 = int_to_ptr.vmem [resolvable:$true] %s68
      %s70 = sshll.u32 %s3, 4
      %s71 = int_to_ptr.hbm [resolvable:$true] %s70
      %73 = dma.vmem_to_hbm [thread:$0]  %s69, 128, %s71, [#allocation3]
    $region17: #{tpu_custom_call.1} parent=1 // pred_fallthru
      _
    // Predicated region
    $region18: #{tpu_custom_call.1} parent=1 // pred_check
      _
    $region19: #{tpu_custom_call.1} parent=1 // pred_check_branch
      %75 = sbr.rel (0) target = $region21
    $region20: #{tpu_custom_call.1} parent=1 // pred_region
      _
    $region21: #{tpu_custom_call.1} parent=1 // pred_fallthru
      _
    // Predicated region
    $region22: #{tpu_custom_call.1} parent=1 // pred_check
      _
    $region23: #{tpu_custom_call.1} parent=1 // pred_check_branch
      %77 = sbr.rel (0) target = $region25
    $region24: #{tpu_custom_call.1} parent=1 // pred_region
      %79 = dma.done [#allocation3], 128
    $region25: #{tpu_custom_call.1} parent=1 // pred_fallthru
      _
    %80 = vsyncpa [#allocation3], 1

</llo_original>
